<compile_context>
chip_gen: v6e
topology: v6e:2x2x1
jax: 0.10.0
libtpu: 0.0.40
codegen_flags: <defaults>
</compile_context>

<pallas_src>
from typing import Optional, Union

import jax
import jax.numpy as jnp
from jax import lax
from jax.experimental import pallas as pl
from jax.experimental.pallas import tpu as pltpu

IntOrPair = Union[int, tuple]


def force_pair(v: IntOrPair):
    if isinstance(v, tuple):
        if len(v) != 2:
            raise ValueError(v)
        return (int(v[0]), int(v[1]))
    elif isinstance(v, int):
        return (v, v)
    raise ValueError(v)


def _round_up(x, m):
    return (x + m - 1) // m * m


def _ds(start, size, stride):
    # pl.ds with stride only when actually strided.
    return pl.ds(start, size) if stride == 1 else pl.ds(start, size, stride)


def _pick_channel_tile(C, block_bytes_fn, budget_bytes):
    """Largest channel tile (full C, else a 128-multiple divisor) fitting the budget."""
    if block_bytes_fn(C) <= budget_bytes:
        return C
    lane_divs = sorted((d for d in range(128, C + 1, 128) if C % d == 0), reverse=True)
    for d in lane_divs:
        if block_bytes_fn(d) <= budget_bytes:
            return d
    return lane_divs[-1] if lane_divs else C


def maxpool2d_pallas(x, kernel_size: IntOrPair, stride: Optional[IntOrPair] = None,
                     padding: IntOrPair = 1):
    """MaxPool2d forward, semantics identical to the course PyTorch module (NCHW in/out).

    Note: default padding=1 matches the course module, not nn.MaxPool2d's default of 0.
    """
    kh, kw = force_pair(kernel_size)
    if stride is None:
        stride = kernel_size
    sh, sw = force_pair(stride)
    ph, pw = force_pair(padding)

    B, C, H, W = x.shape
    Ho = (H + 2 * ph - kh) // sh + 1
    Wo = (W + 2 * pw - kw) // sw + 1

    dtype = x.dtype
    itemsize = jnp.dtype(dtype).itemsize
    pad_val = -jnp.inf if jnp.issubdtype(dtype, jnp.floating) else jnp.iinfo(dtype).min

    # Padded extent actually touched by the pooling windows.
    Hn = (Ho - 1) * sh + kh          # <= H + 2*ph
    Wn = (Wo - 1) * sw + kw          # <= W + 2*pw
    need_pad = (ph > 0) or (pw > 0)
    # Rows/cols of the real input that land inside the touched region.
    Hc = min(H, Hn - ph)
    Wc = min(W, Wn - pw)

    # Separable (H-then-W) reduction only when it reduces VMEM read traffic.
    nonsep_cost = kh * kw
    sep_cost = (kh + 1) * (Wn / max(Wo, 1)) + kw
    use_separable = sep_cost < nonsep_cost

    # --- channel tiling: channels live on the lane axis --------------------
    def block_bytes(tc):
        tcp = _round_up(tc, 128)                       # lane padding
        in_blk = H * _round_up(W, 8) * tcp * itemsize
        out_blk = Ho * _round_up(Wo, 8) * tcp * itemsize
        scr = 0
        if use_separable:
            scr += Ho * _round_up(Wn, 8) * tcp * itemsize
        if need_pad:
            scr += Hn * _round_up(Wn, 8) * tcp * itemsize
        return 2 * in_blk + 2 * out_blk + scr          # double-buffered in/out

    budget = 24 << 20                                  # safe for v7x's 64 MiB VMEM
    tc = _pick_channel_tile(C, block_bytes, budget)
    vmem_limit = int(min(64 << 20, max(int(1.5 * block_bytes(tc)), 16 << 20)))

    # TODO(synk): for very large H*W the full-height block can still exceed the VMEM
    # budget; tiling H needs an overlapping (halo) BlockSpec or manual DMA — not done here.

    def kernel(x_ref, o_ref, *scratch):
        idx = 0
        if use_separable:
            rowmax_ref = scratch[idx]; idx += 1
        if need_pad:
            pad_ref = scratch[idx]; idx += 1
            # Fill only the border strips each step (cheap, and correct regardless of
            # megacore grid sharding / scratch persistence).
            top, bottom = ph, Hn - ph - Hc
            left, right = pw, Wn - pw - Wc
            if top > 0:
                pad_ref[pl.ds(0, top), :, :] = jnp.full((top, Wn, tc), pad_val, dtype)
            if bottom > 0:
                pad_ref[pl.ds(ph + Hc, bottom), :, :] = jnp.full((bottom, Wn, tc), pad_val, dtype)
            if left > 0:
                pad_ref[:, pl.ds(0, left), :] = jnp.full((Hn, left, tc), pad_val, dtype)
            if right > 0:
                pad_ref[:, pl.ds(pw + Wc, right), :] = jnp.full((Hn, right, tc), pad_val, dtype)
            # Copy the real interior into the -inf frame (VMEM-only, no HBM pad pass).
            pad_ref[pl.ds(ph, Hc), pl.ds(pw, Wc), :] = x_ref[pl.ds(0, Hc), pl.ds(0, Wc), :]
            src = pad_ref
        else:
            src = x_ref

        if use_separable:
            # Pass 1: reduce over kernel-H offsets -> (Ho, Wn, tc).
            acc = None
            for i in range(kh):
                row = src[_ds(i, Ho, sh), pl.ds(0, Wn), :]
                acc = row if acc is None else jnp.maximum(acc, row)
            rowmax_ref[...] = acc
            # Pass 2: reduce over kernel-W offsets -> (Ho, Wo, tc).
            out = None
            for j in range(kw):
                col = rowmax_ref[:, _ds(j, Wo, sw), :]
                out = col if out is None else jnp.maximum(out, col)
        else:
            # Plain kh*kw window folding; accumulator seeded from the first window.
            out = None
            for i in range(kh):
                for j in range(kw):
                    win = src[_ds(i, Ho, sh), _ds(j, Wo, sw), :]
                    out = win if out is None else jnp.maximum(out, win)

        o_ref[...] = out

    scratch_shapes = []
    if use_separable:
        scratch_shapes.append(pltpu.VMEM((Ho, Wn, tc), dtype))
    if need_pad:
        scratch_shapes.append(pltpu.VMEM((Hn, Wn, tc), dtype))

    cost = pl.CostEstimate(
        flops=B * C * Ho * Wo * kh * kw,
        transcendentals=0,
        bytes_accessed=(B * C * H * W + B * C * Ho * Wo) * itemsize,
    )

    # Layout plumbing: put channels on the lane axis.
    x_nhwc = jnp.transpose(x, (0, 2, 3, 1))            # (B, H, W, C)

    out_nhwc = pl.pallas_call(
        kernel,
        out_shape=jax.ShapeDtypeStruct((B, Ho, Wo, C), dtype),
        grid=(B, C // tc),
        in_specs=[pl.BlockSpec((None, H, W, tc), lambda b, c: (b, 0, 0, c))],
        out_specs=pl.BlockSpec((None, Ho, Wo, tc), lambda b, c: (b, 0, 0, c)),
        scratch_shapes=scratch_shapes,
        compiler_params=pltpu.CompilerParams(
            dimension_semantics=("parallel", "parallel"),
            vmem_limit_bytes=vmem_limit),
        cost_estimate=cost,
    )(x_nhwc)

    return jnp.transpose(out_nhwc, (0, 3, 1, 2))       # back to NCHW


def maxpool2d_ref(x, kernel_size, stride=None, padding=1):
    """Pure-JAX reference (lax.reduce_window) with the same semantics."""
    kh, kw = force_pair(kernel_size)
    if stride is None:
        stride = kernel_size
    sh, sw = force_pair(stride)
    ph, pw = force_pair(padding)
    xp = jnp.pad(x, ((0, 0), (0, 0), (ph, ph), (pw, pw)),
                 constant_values=-jnp.inf)
    return lax.reduce_window(xp, -jnp.inf, lax.max,
                             window_dimensions=(1, 1, kh, kw),
                             window_strides=(1, 1, sh, sw),
                             padding="VALID")


if __name__ == "__main__":
    key = jax.random.PRNGKey(0)
    # Small NCHW input consistent with the module's forward.
    x = jax.random.normal(key, (2, 4, 16, 16), dtype=jnp.float32)

    # Module config: kernel_size=2, stride=None (-> 2), padding=1 (module default).
    out = maxpool2d_pallas(x, kernel_size=2, stride=None, padding=1)
    out = jax.block_until_ready(out)
    ref = maxpool2d_ref(x, kernel_size=2, stride=None, padding=1)
    assert out.shape == (2, 4, 9, 9), out.shape
    assert jnp.allclose(out, ref), "Pallas maxpool output mismatch vs reference (2x2/s2/p1)"

    # Extra configs: separable path (3x3, stride 1) and no-padding fast path.
    out2 = jax.block_until_ready(maxpool2d_pallas(x, kernel_size=3, stride=1, padding=1))
    ref2 = maxpool2d_ref(x, kernel_size=3, stride=1, padding=1)
    assert jnp.allclose(out2, ref2), "Pallas maxpool output mismatch vs reference (3x3/s1/p1)"

    out3 = jax.block_until_ready(maxpool2d_pallas(x, kernel_size=2, stride=2, padding=0))
    ref3 = maxpool2d_ref(x, kernel_size=2, stride=2, padding=0)
    assert jnp.allclose(out3, ref3), "Pallas maxpool output mismatch vs reference (2x2/s2/p0)"

    print("KERNEL_OK")
</pallas_src>

<mosaic_0001>
module attributes {stable_mosaic.version = 11 : i64} {
  func.func @kernel(%arg0: i32, %arg1: i32, %arg2: memref<1x16x16x4xf32, #tpu.memory_space<vmem>>, %arg3: memref<1x9x9x4xf32, #tpu.memory_space<vmem>>, %arg4: memref<18x18x4xf32, #tpu.memory_space<vmem>>) attributes {dimension_semantics = [#tpu.dimension_semantics<parallel>, #tpu.dimension_semantics<parallel>], iteration_bounds = array<i64: 2, 1>, scalar_prefetch = 0 : i64, scratch_operands = 1 : i64, tpu.core_type = #tpu.core_type<tc>, window_params = [{transform_indices = @transform_0, window_bounds = array<i64: 1, 16, 16, 4>}, {transform_indices = @transform_1, window_bounds = array<i64: 1, 9, 9, 4>}]} {
    %cst = arith.constant 0xFF800000 : f32
    %0 = vector.broadcast %cst : f32 to vector<1x18x4xf32>
    %c0 = arith.constant 0 : index
    %c0_0 = arith.constant 0 : index
    %c0_1 = arith.constant 0 : index
    %1 = vector.load %arg4[%c0, %c0_0, %c0_1] : memref<18x18x4xf32, #tpu.memory_space<vmem>>, vector<1x18x4xf32>
    tpu.vector_store %arg4[%c0, %c0_0, %c0_1], %0 {strides = array<i32>} : memref<18x18x4xf32, #tpu.memory_space<vmem>>, vector<1x18x4xf32>,
    %cst_2 = arith.constant 0xFF800000 : f32
    %2 = vector.broadcast %cst_2 : f32 to vector<1x18x4xf32>
    %c17 = arith.constant 17 : index
    %c0_3 = arith.constant 0 : index
    %c0_4 = arith.constant 0 : index
    %3 = vector.load %arg4[%c17, %c0_3, %c0_4] : memref<18x18x4xf32, #tpu.memory_space<vmem>>, vector<1x18x4xf32>
    tpu.vector_store %arg4[%c17, %c0_3, %c0_4], %2 {strides = array<i32>} : memref<18x18x4xf32, #tpu.memory_space<vmem>>, vector<1x18x4xf32>,
    %cst_5 = arith.constant 0xFF800000 : f32
    %4 = vector.broadcast %cst_5 : f32 to vector<18x1x4xf32>
    %c0_6 = arith.constant 0 : index
    %c0_7 = arith.constant 0 : index
    %c0_8 = arith.constant 0 : index
    %5 = vector.load %arg4[%c0_6, %c0_7, %c0_8] : memref<18x18x4xf32, #tpu.memory_space<vmem>>, vector<18x1x4xf32>
    tpu.vector_store %arg4[%c0_6, %c0_7, %c0_8], %4 {strides = array<i32>} : memref<18x18x4xf32, #tpu.memory_space<vmem>>, vector<18x1x4xf32>,
    %cst_9 = arith.constant 0xFF800000 : f32
    %6 = vector.broadcast %cst_9 : f32 to vector<18x1x4xf32>
    %c0_10 = arith.constant 0 : index
    %c17_11 = arith.constant 17 : index
    %c0_12 = arith.constant 0 : index
    %7 = vector.load %arg4[%c0_10, %c17_11, %c0_12] : memref<18x18x4xf32, #tpu.memory_space<vmem>>, vector<18x1x4xf32>
    tpu.vector_store %arg4[%c0_10, %c17_11, %c0_12], %6 {strides = array<i32>} : memref<18x18x4xf32, #tpu.memory_space<vmem>>, vector<18x1x4xf32>,
    %c0_13 = arith.constant 0 : index
    %c0_14 = arith.constant 0 : index
    %c0_15 = arith.constant 0 : index
    %c0_16 = arith.constant 0 : index
    %8 = vector.load %arg2[%c0_13, %c0_14, %c0_15, %c0_16] : memref<1x16x16x4xf32, #tpu.memory_space<vmem>>, vector<1x16x16x4xf32>
    %9 = vector.shape_cast %8 : vector<1x16x16x4xf32> to vector<16x16x4xf32>
    %c1 = arith.constant 1 : index
    %c1_17 = arith.constant 1 : index
    %c0_18 = arith.constant 0 : index
    %10 = vector.load %arg4[%c1, %c1_17, %c0_18] : memref<18x18x4xf32, #tpu.memory_space<vmem>>, vector<16x16x4xf32>
    tpu.vector_store %arg4[%c1, %c1_17, %c0_18], %9 {strides = array<i32>} : memref<18x18x4xf32, #tpu.memory_space<vmem>>, vector<16x16x4xf32>,
    %c0_19 = arith.constant 0 : index
    %c0_20 = arith.constant 0 : index
    %c0_21 = arith.constant 0 : index
    %11 = tpu.strided_load %arg4[%c0_19, %c0_20, %c0_21] {strides = array<i32: 2, 2, 1>} : memref<18x18x4xf32, #tpu.memory_space<vmem>>, vector<9x9x4xf32>
    %c0_22 = arith.constant 0 : index
    %c1_23 = arith.constant 1 : index
    %c0_24 = arith.constant 0 : index
    %12 = tpu.strided_load %arg4[%c0_22, %c1_23, %c0_24] {strides = array<i32: 2, 2, 1>} : memref<18x18x4xf32, #tpu.memory_space<vmem>>, vector<9x9x4xf32>
    %13 = arith.maximumf %11, %12 : vector<9x9x4xf32>
    %c1_25 = arith.constant 1 : index
    %c0_26 = arith.constant 0 : index
    %c0_27 = arith.constant 0 : index
    %14 = tpu.strided_load %arg4[%c1_25, %c0_26, %c0_27] {strides = array<i32: 2, 2, 1>} : memref<18x18x4xf32, #tpu.memory_space<vmem>>, vector<9x9x4xf32>
    %15 = arith.maximumf %13, %14 : vector<9x9x4xf32>
    %c1_28 = arith.constant 1 : index
    %c1_29 = arith.constant 1 : index
    %c0_30 = arith.constant 0 : index
    %16 = tpu.strided_load %arg4[%c1_28, %c1_29, %c0_30] {strides = array<i32: 2, 2, 1>} : memref<18x18x4xf32, #tpu.memory_space<vmem>>, vector<9x9x4xf32>
    %17 = arith.maximumf %15, %16 : vector<9x9x4xf32>
    %c0_31 = arith.constant 0 : index
    %c0_32 = arith.constant 0 : index
    %c0_33 = arith.constant 0 : index
    %c0_34 = arith.constant 0 : index
    %18 = vector.load %arg3[%c0_31, %c0_32, %c0_33, %c0_34] : memref<1x9x9x4xf32, #tpu.memory_space<vmem>>, vector<1x9x9x4xf32>
    %19 = vector.shape_cast %18 : vector<1x9x9x4xf32> to vector<9x9x4xf32>
    %20 = vector.shape_cast %17 : vector<9x9x4xf32> to vector<1x9x9x4xf32>
    tpu.vector_store %arg3[%c0_31, %c0_32, %c0_33, %c0_34], %20 {strides = array<i32>} : memref<1x9x9x4xf32, #tpu.memory_space<vmem>>, vector<1x9x9x4xf32>,
    return
  }
  func.func @transform_0(%arg0: i32, %arg1: i32) -> (i32, i32, i32, i32) {
    %c0_i32 = arith.constant 0 : i32
    %c0_i32_0 = arith.constant 0 : i32
    %c0_i32_1 = arith.constant 0 : i32
    return %arg0, %c0_i32, %c0_i32_0, %arg1 : i32, i32, i32, i32
  }
  func.func @transform_1(%arg0: i32, %arg1: i32) -> (i32, i32, i32, i32) {
    %c0_i32 = arith.constant 0 : i32
    %c0_i32_0 = arith.constant 0 : i32
    %c0_i32_1 = arith.constant 0 : i32
    return %arg0, %c0_i32, %c0_i32_0, %arg1 : i32, i32, i32, i32
  }
}

</mosaic_0001>

<llo_original>
// kernel: tpu_custom_call.1
$region0: #{tpu_custom_call.1}
  #allocation0 [shape = 'u32[]', space=smem, size = 0x4, offset = 0x4, fixed_abs, tag = 'smem constant byte address 0x4 - core index']
  #allocation1 [shape = 'u32[144,128]{1,0:T(1,128)}', space=vmem, size = 0x12000, scoped, tag = 'internal scratch']
  #allocation2 [shape = 'f32[18,18,4]{2,1,0:T(8,128)}', space=vmem, size = 0x36000, scoped, tag = 'scratch operand']
  %s0 = inlined_call_operand.vmem [shape: f32[2,16,16,4], index: 0, kind: input, shape index: {}]
  %s1 = inlined_call_operand.vmem [shape: f32[2,9,9,4], index: 1, kind: output, shape index: {}]
  %s2 = sld [smem:[#allocation0]]
  $region37: #{tpu_custom_call.1} parent=0
    _
  %s4 = ssub.s32 1, %s2
  %s5 = scalar_select 0, %s4, %s2
  loop: start=0, step=1, limit=4
  $region2: #{tpu_custom_call.1} parent=0 // loop_pre_header
    _
  $region3: #{tpu_custom_call.1} parent=0 // loop_header
    %s7 = sphi 0, %s11
    %p8 = scmp.ge.s32.totalorder %s7, 4
    %s14 = sphi 0, %s26
    %s15 = sphi 0, %s22
    %s16 = sphi 0, %s14
    %s17 = sphi 0, %s15
    %s18 = sphi 0, %s16
    %s19 = sphi 0, %s17
    %s31 = sphi 0, %s33
    %s34 = sphi 0, %s31
    %s35 = sphi 0, %s34
    %s51 = sphi 0, %s35
    %s59 = sphi 0, %s61
    %s62 = sphi 0, %s59
    %s63 = sphi 0, %s62
    %s79 = sphi 0, %s63
  $region4: #{tpu_custom_call.1} parent=0 // loop_header_branch
    %10 = sbr.rel (%p8) target = $region8
  $region5: #{tpu_custom_call.1} parent=0 // loop_body
    %s12 = ssub.s32 %s7, 1
    %s13 = ssub.s32 %s7, 2
    %s20 = sadd.s32 1, %s15
    %p21 = scmp.ge.s32.totalorder %s20, 1
    %s22 = scalar_select %p21, 0, %s20
    %s23 = sadd.s32 1, %s14
    %s24 = scalar_select %p21, %s23, %s14
    %p25 = scmp.ge.s32.totalorder %s24, 2
    %s26 = scalar_select %p25, 0, %s24
    %s27 = ssub.s32 %s14, %s26
    %s28 = ssub.s32 %s15, %s22
    %s29 = sor.u32 %s27, %s28
    %p30 = scmp.eq.s32.totalorder %s29, 0
    %s32 = sadd.s32 %s31, 1
    %s33 = scalar_select %p30, %s31, %s32
    %p36 = pneg %p30
    %p37 = scmp.eq.s32.totalorder %s7, 1
    %p38 = por %p36, %p37
    %p39 = scmp.ne.s32.totalorder %s31, %s34
    %p40 = scmp.eq.s32.totalorder %s7, 0
    %p41 = por %p39, %p40
    %p42 = scmp.ne.s32.totalorder %s31, %s34
    %p43 = scmp.eq.s32.totalorder %s12, 1
    %p44 = por %p42, %p43
    %p45 = scmp.ne.s32.totalorder %s34, %s35
    %p46 = scmp.eq.s32.totalorder %s12, 0
    %p47 = por %p45, %p46
    %p48 = scmp.ne.s32.totalorder %s34, %s35
    %p49 = scmp.eq.s32.totalorder %s13, 1
    %p50 = por %p48, %p49
    %p52 = scmp.ne.s32.totalorder %s35, %s51
    %p53 = scmp.eq.s32.totalorder %s13, 0
    %p54 = por %p52, %p53
    %s55 = ssub.s32 %s14, %s26
    %s56 = ssub.s32 %s15, %s22
    %s57 = sor.u32 %s55, %s56
    %p58 = scmp.eq.s32.totalorder %s57, 0
    %s60 = sadd.s32 %s59, 1
    %s61 = scalar_select %p58, %s59, %s60
    %p64 = pneg %p58
    %p65 = scmp.eq.s32.totalorder %s7, 1
    %p66 = por %p64, %p65
    %p67 = scmp.ne.s32.totalorder %s59, %s62
    %p68 = scmp.eq.s32.totalorder %s7, 0
    %p69 = por %p67, %p68
    %p70 = scmp.ne.s32.totalorder %s59, %s62
    %p71 = scmp.eq.s32.totalorder %s12, 1
    %p72 = por %p70, %p71
    %p73 = scmp.ne.s32.totalorder %s62, %s63
    %p74 = scmp.eq.s32.totalorder %s12, 0
    %p75 = por %p73, %p74
    %p76 = scmp.ne.s32.totalorder %s62, %s63
    %p77 = scmp.eq.s32.totalorder %s13, 1
    %p78 = por %p76, %p77
    %p80 = scmp.ne.s32.totalorder %s63, %s79
    %p81 = scmp.eq.s32.totalorder %s13, 0
    %p82 = por %p80, %p81
    %p83 = scmp.le.s32.totalorder 1, %s7
    %p84 = scmp.lt.s32.totalorder %s7, 3
    %p85 = pnand %p83, %p84
    %p86 = pneg %p85
    // Predicated region
    $region9: #{tpu_custom_call.1} parent=5 // pred_check
      _
    $region10: #{tpu_custom_call.1} parent=5 // pred_check_branch
      %88 = sbr.rel (%p85) target = $region12
    $region11: #{tpu_custom_call.1} parent=5 // pred_region
      %s89 = ssub.s32 %s7, 1
    $region12: #{tpu_custom_call.1} parent=5 // pred_fallthru
      _
    %p90 = scmp.lt.s32.totalorder %s7, 2
    // Predicated region
    $region13: #{tpu_custom_call.1} parent=5 // pred_check
      %p91 = pneg %p90
    $region14: #{tpu_custom_call.1} parent=5 // pred_check_branch
      %93 = sbr.rel (%p91) target = $region16
    $region15: #{tpu_custom_call.1} parent=5 // pred_region
      // Predicated region
      $region17: #{tpu_custom_call.1} parent=15 // pred_check
        %p94 = pneg %p41
      $region18: #{tpu_custom_call.1} parent=15 // pred_check_branch
        %96 = sbr.rel (%p94) target = $region20
      $region19: #{tpu_custom_call.1} parent=15 // pred_region
        %p97 = scmp.lt.s32.totalorder %s14, 1
        %s98 = scalar_select %p97, %s14, 1
        %p99 = scmp.lt.s32.totalorder %s15, 0
        %s100 = scalar_select %p99, %s15, 0
        %s101 = smul.addr %s98, 32
        %s102 = sadd.s32 %s100, %s101
        %s103 = smul.addr %s102, 8
        %s104 = scalar_lea.vmem %s0, %s103
      $region20: #{tpu_custom_call.1} parent=15 // pred_fallthru
        _
    $region16: #{tpu_custom_call.1} parent=5 // pred_fallthru
      _
    %p105 = scmp.le.s32.totalorder 1, %s7
    %p106 = scmp.lt.s32.totalorder %s7, 3
    %p107 = pnand %p105, %p106
    %p108 = pneg %p107
    // Predicated region
    $region21: #{tpu_custom_call.1} parent=5 // pred_check
      _
    $region22: #{tpu_custom_call.1} parent=5 // pred_check_branch
      %110 = sbr.rel (%p107) target = $region24
    $region23: #{tpu_custom_call.1} parent=5 // pred_region
      %s111 = ssub.s32 %s7, 1
      %p112 = scmp.lt.s32.totalorder %s16, 1
      %s113 = scalar_select %p112, %s16, 1
      %p114 = scmp.lt.s32.totalorder %s17, 0
      %s115 = scalar_select %p114, %s17, 0
      %s116 = smul.addr %s113, 32
      %s117 = sadd.s32 %s115, %s116
      %s118 = smul.addr %s117, 8
      %s119 = scalar_lea.vmem %s0, %s118
      %p120 = pneg %p47
      %p121 = pneg %p44
      %p122 = pneg %p75
      %p123 = pneg %p72
      %p124 = scmp.lt.s32.totalorder %s16, 1
      %s125 = scalar_select %p124, %s16, 1
      %p126 = scmp.lt.s32.totalorder %s17, 0
      %s127 = scalar_select %p126, %s17, 0
      %s128 = smul.addr %s125, 18
      %s129 = sadd.s32 %s127, %s128
      %s130 = smul.addr %s129, 8
      %s131 = scalar_lea.vmem %s1, %s130
      %p132 = scmp.lt.s32.totalorder %s16, 1
      %s133 = scalar_select %p132, %s16, 1
      %p134 = scmp.lt.s32.totalorder %s17, 0
      %s135 = scalar_select %p134, %s17, 0
      %s136 = smul.addr %s133, 32
      %s137 = sadd.s32 %s135, %s136
      %s138 = smul.addr %s137, 8
      %s139 = scalar_lea.vmem %s0, %s138
      %p140 = scmp.lt.s32.totalorder %s16, 1
      %s141 = scalar_select %p140, %s16, 1
      %p142 = scmp.lt.s32.totalorder %s17, 0
      %s143 = scalar_select %p142, %s17, 0
      %s144 = smul.addr %s141, 18
      %s145 = sadd.s32 %s143, %s144
      %s146 = smul.addr %s145, 8
      %s147 = scalar_lea.vmem %s1, %s146
      %vm148 = vcmask 31744
      %149 = vst.msk [vmem:[#allocation2] sm:$0xff] %vm148, -inf
      %150 = vst.msk [vmem:[#allocation2 + $0x8] sm:$0xff] %vm148, -inf
      %vm151 = vcmask 25600
      %152 = vst.msk [vmem:[#allocation2 + $0x10] sm:$0x3] %vm151, -inf
      %s153 = scalar_lea.vmem [#allocation2], 408
      %154 = vst.msk [vmem:[%s153] sm:$0xff] %vm148, -inf
      %155 = vst.msk [vmem:[%s153 + $0x8] sm:$0xff] %vm148, -inf
      %156 = vst.msk [vmem:[%s153 + $0x10] sm:$0x3] %vm151, -inf
      %vm157 = vcmask 24576
      %158 = vst.msk [vmem:[#allocation2] sm:$0x1] %vm157, -inf
      %159 = vst.msk [vmem:[#allocation2 + $0x18] sm:$0x1] %vm157, -inf
      %160 = vst.msk [vmem:[#allocation2 + $0x30] sm:$0x1] %vm157, -inf
      %161 = vst.msk [vmem:[#allocation2 + $0x48] sm:$0x1] %vm157, -inf
      %162 = vst.msk [vmem:[#allocation2 + $0x60] sm:$0x1] %vm157, -inf
      %163 = vst.msk [vmem:[#allocation2 + $0x78] sm:$0x1] %vm157, -inf
      %164 = vst.msk [vmem:[#allocation2 + $0x90] sm:$0x1] %vm157, -inf
      %165 = vst.msk [vmem:[#allocation2 + $0xa8] sm:$0x1] %vm157, -inf
      %166 = vst.msk [vmem:[#allocation2 + $0xc0] sm:$0x1] %vm157, -inf
      %167 = vst.msk [vmem:[#allocation2 + $0xd8] sm:$0x1] %vm157, -inf
      %168 = vst.msk [vmem:[#allocation2 + $0xf0] sm:$0x1] %vm157, -inf
      %169 = vst.msk [vmem:[#allocation2 + $0x108] sm:$0x1] %vm157, -inf
      %170 = vst.msk [vmem:[#allocation2 + $0x120] sm:$0x1] %vm157, -inf
      %171 = vst.msk [vmem:[#allocation2 + $0x138] sm:$0x1] %vm157, -inf
      %172 = vst.msk [vmem:[#allocation2 + $0x150] sm:$0x1] %vm157, -inf
      %173 = vst.msk [vmem:[#allocation2 + $0x168] sm:$0x1] %vm157, -inf
      %174 = vst.msk [vmem:[#allocation2 + $0x180] sm:$0x1] %vm157, -inf
      %175 = vst.msk [vmem:[#allocation2 + $0x198] sm:$0x1] %vm157, -inf
      %176 = vst.msk [vmem:[#allocation2 + $0x11] sm:$0x1] %vm157, -inf
      %177 = vst.msk [vmem:[#allocation2 + $0x29] sm:$0x1] %vm157, -inf
      %178 = vst.msk [vmem:[#allocation2 + $0x41] sm:$0x1] %vm157, -inf
      %179 = vst.msk [vmem:[#allocation2 + $0x59] sm:$0x1] %vm157, -inf
      %180 = vst.msk [vmem:[#allocation2 + $0x71] sm:$0x1] %vm157, -inf
      %181 = vst.msk [vmem:[#allocation2 + $0x89] sm:$0x1] %vm157, -inf
      %182 = vst.msk [vmem:[#allocation2 + $0xa1] sm:$0x1] %vm157, -inf
      %183 = vst.msk [vmem:[#allocation2 + $0xb9] sm:$0x1] %vm157, -inf
      %184 = vst.msk [vmem:[#allocation2 + $0xd1] sm:$0x1] %vm157, -inf
      %185 = vst.msk [vmem:[#allocation2 + $0xe9] sm:$0x1] %vm157, -inf
      %186 = vst.msk [vmem:[#allocation2 + $0x101] sm:$0x1] %vm157, -inf
      %187 = vst.msk [vmem:[#allocation2 + $0x119] sm:$0x1] %vm157, -inf
      %188 = vst.msk [vmem:[#allocation2 + $0x131] sm:$0x1] %vm157, -inf
      %189 = vst.msk [vmem:[#allocation2 + $0x149] sm:$0x1] %vm157, -inf
      %190 = vst.msk [vmem:[#allocation2 + $0x161] sm:$0x1] %vm157, -inf
      %191 = vst.msk [vmem:[#allocation2 + $0x179] sm:$0x1] %vm157, -inf
      %192 = vst.msk [vmem:[#allocation2 + $0x191] sm:$0x1] %vm157, -inf
      %193 = vst.msk [vmem:[#allocation2 + $0x1a9] sm:$0x1] %vm157, -inf
      %v194 = vld [vmem:[%s139] sm:$0xff]
      %v195 = vld [vmem:[%s139 + $0x8] sm:$0xff]
      %v196 = vld [vmem:[%s139 + $0x10] sm:$0xff]
      %v197 = vld [vmem:[%s139 + $0x18] sm:$0xff]
      %v198 = vld [vmem:[%s139 + $0x20] sm:$0xff]
      %v199 = vld [vmem:[%s139 + $0x28] sm:$0xff]
      %v200 = vld [vmem:[%s139 + $0x30] sm:$0xff]
      %v201 = vld [vmem:[%s139 + $0x38] sm:$0xff]
      %v202 = vld [vmem:[%s139 + $0x40] sm:$0xff]
      %v203 = vld [vmem:[%s139 + $0x48] sm:$0xff]
      %v204 = vld [vmem:[%s139 + $0x50] sm:$0xff]
      %v205 = vld [vmem:[%s139 + $0x58] sm:$0xff]
      %v206 = vld [vmem:[%s139 + $0x60] sm:$0xff]
      %v207 = vld [vmem:[%s139 + $0x68] sm:$0xff]
      %v208 = vld [vmem:[%s139 + $0x70] sm:$0xff]
      %v209 = vld [vmem:[%s139 + $0x78] sm:$0xff]
      %v210 = vld [vmem:[%s139 + $0x80] sm:$0xff]
      %v211 = vld [vmem:[%s139 + $0x88] sm:$0xff]
      %v212 = vld [vmem:[%s139 + $0x90] sm:$0xff]
      %v213 = vld [vmem:[%s139 + $0x98] sm:$0xff]
      %v214 = vld [vmem:[%s139 + $0xa0] sm:$0xff]
      %v215 = vld [vmem:[%s139 + $0xa8] sm:$0xff]
      %v216 = vld [vmem:[%s139 + $0xb0] sm:$0xff]
      %v217 = vld [vmem:[%s139 + $0xb8] sm:$0xff]
      %v218 = vld [vmem:[%s139 + $0xc0] sm:$0xff]
      %v219 = vld [vmem:[%s139 + $0xc8] sm:$0xff]
      %v220 = vld [vmem:[%s139 + $0xd0] sm:$0xff]
      %v221 = vld [vmem:[%s139 + $0xd8] sm:$0xff]
      %v222 = vld [vmem:[%s139 + $0xe0] sm:$0xff]
      %v223 = vld [vmem:[%s139 + $0xe8] sm:$0xff]
      %v224 = vld [vmem:[%s139 + $0xf0] sm:$0xff]
      %v225 = vld [vmem:[%s139 + $0xf8] sm:$0xff]
      %s226 = scalar_lea.vmem [#allocation2], 24
      %227 = vst.msk [vmem:[%s226 + $0x1] sm:$0xff] %vm148, %v194
      %228 = vst.msk [vmem:[%s226 + $0x9] sm:$0xff] %vm148, %v195
      %229 = vst.msk [vmem:[%s226 + $0x19] sm:$0xff] %vm148, %v196
      %230 = vst.msk [vmem:[%s226 + $0x21] sm:$0xff] %vm148, %v197
      %231 = vst.msk [vmem:[%s226 + $0x31] sm:$0xff] %vm148, %v198
      %232 = vst.msk [vmem:[%s226 + $0x39] sm:$0xff] %vm148, %v199
      %233 = vst.msk [vmem:[%s226 + $0x49] sm:$0xff] %vm148, %v200
      %234 = vst.msk [vmem:[%s226 + $0x51] sm:$0xff] %vm148, %v201
      %235 = vst.msk [vmem:[%s226 + $0x61] sm:$0xff] %vm148, %v202
      %236 = vst.msk [vmem:[%s226 + $0x69] sm:$0xff] %vm148, %v203
      %237 = vst.msk [vmem:[%s226 + $0x79] sm:$0xff] %vm148, %v204
      %238 = vst.msk [vmem:[%s226 + $0x81] sm:$0xff] %vm148, %v205
      %239 = vst.msk [vmem:[%s226 + $0x91] sm:$0xff] %vm148, %v206
      %240 = vst.msk [vmem:[%s226 + $0x99] sm:$0xff] %vm148, %v207
      %241 = vst.msk [vmem:[%s226 + $0xa9] sm:$0xff] %vm148, %v208
      %242 = vst.msk [vmem:[%s226 + $0xb1] sm:$0xff] %vm148, %v209
      %243 = vst.msk [vmem:[%s226 + $0xc1] sm:$0xff] %vm148, %v210
      %244 = vst.msk [vmem:[%s226 + $0xc9] sm:$0xff] %vm148, %v211
      %245 = vst.msk [vmem:[%s226 + $0xd9] sm:$0xff] %vm148, %v212
      %246 = vst.msk [vmem:[%s226 + $0xe1] sm:$0xff] %vm148, %v213
      %247 = vst.msk [vmem:[%s226 + $0xf1] sm:$0xff] %vm148, %v214
      %248 = vst.msk [vmem:[%s226 + $0xf9] sm:$0xff] %vm148, %v215
      %249 = vst.msk [vmem:[%s226 + $0x109] sm:$0xff] %vm148, %v216
      %250 = vst.msk [vmem:[%s226 + $0x111] sm:$0xff] %vm148, %v217
      %251 = vst.msk [vmem:[%s226 + $0x121] sm:$0xff] %vm148, %v218
      %252 = vst.msk [vmem:[%s226 + $0x129] sm:$0xff] %vm148, %v219
      %253 = vst.msk [vmem:[%s226 + $0x139] sm:$0xff] %vm148, %v220
      %254 = vst.msk [vmem:[%s226 + $0x141] sm:$0xff] %vm148, %v221
      %255 = vst.msk [vmem:[%s226 + $0x151] sm:$0xff] %vm148, %v222
      %256 = vst.msk [vmem:[%s226 + $0x159] sm:$0xff] %vm148, %v223
      %257 = vst.msk [vmem:[%s226 + $0x169] sm:$0xff] %vm148, %v224
      %258 = vst.msk [vmem:[%s226 + $0x171] sm:$0xff] %vm148, %v225
      %v259 = vld [vmem:[#allocation2] ss:$2 sm:$0xff]
      %s260 = scalar_lea.vmem [#allocation2], 16
      %v261 = vld [vmem:[%s260] ss:$2 sm:$0x1]
      %s262 = scalar_lea.vmem [#allocation2], 48
      %v263 = vld [vmem:[%s262] ss:$2 sm:$0xff]
      %s264 = scalar_lea.vmem [#allocation2], 64
      %v265 = vld [vmem:[%s264] ss:$2 sm:$0x1]
      %s266 = scalar_lea.vmem [#allocation2], 96
      %v267 = vld [vmem:[%s266] ss:$2 sm:$0xff]
      %s268 = scalar_lea.vmem [#allocation2], 112
      %v269 = vld [vmem:[%s268] ss:$2 sm:$0x1]
      %s270 = scalar_lea.vmem [#allocation2], 144
      %v271 = vld [vmem:[%s270] ss:$2 sm:$0xff]
      %s272 = scalar_lea.vmem [#allocation2], 160
      %v273 = vld [vmem:[%s272] ss:$2 sm:$0x1]
      %s274 = scalar_lea.vmem [#allocation2], 192
      %v275 = vld [vmem:[%s274] ss:$2 sm:$0xff]
      %s276 = scalar_lea.vmem [#allocation2], 208
      %v277 = vld [vmem:[%s276] ss:$2 sm:$0x1]
      %s278 = scalar_lea.vmem [#allocation2], 240
      %v279 = vld [vmem:[%s278] ss:$2 sm:$0xff]
      %s280 = scalar_lea.vmem [#allocation2], 256
      %v281 = vld [vmem:[%s280] ss:$2 sm:$0x1]
      %s282 = scalar_lea.vmem [#allocation2], 288
      %v283 = vld [vmem:[%s282] ss:$2 sm:$0xff]
      %s284 = scalar_lea.vmem [#allocation2], 304
      %v285 = vld [vmem:[%s284] ss:$2 sm:$0x1]
      %s286 = scalar_lea.vmem [#allocation2], 336
      %v287 = vld [vmem:[%s286] ss:$2 sm:$0xff]
      %s288 = scalar_lea.vmem [#allocation2], 352
      %v289 = vld [vmem:[%s288] ss:$2 sm:$0x1]
      %s290 = scalar_lea.vmem [#allocation2], 384
      %v291 = vld [vmem:[%s290] ss:$2 sm:$0xff]
      %s292 = scalar_lea.vmem [#allocation2], 400
      %v293 = vld [vmem:[%s292] ss:$2 sm:$0x1]
      %s294 = scalar_lea.vmem [#allocation2], 1
      %v295 = vld [vmem:[%s294] ss:$2 sm:$0xff]
      %s296 = scalar_lea.vmem [#allocation2], 17
      %v297 = vld [vmem:[%s296] ss:$2 sm:$0x1]
      %s298 = scalar_lea.vmem [#allocation2], 49
      %v299 = vld [vmem:[%s298] ss:$2 sm:$0xff]
      %s300 = scalar_lea.vmem [#allocation2], 65
      %v301 = vld [vmem:[%s300] ss:$2 sm:$0x1]
      %s302 = scalar_lea.vmem [#allocation2], 97
      %v303 = vld [vmem:[%s302] ss:$2 sm:$0xff]
      %s304 = scalar_lea.vmem [#allocation2], 113
      %v305 = vld [vmem:[%s304] ss:$2 sm:$0x1]
      %s306 = scalar_lea.vmem [#allocation2], 145
      %v307 = vld [vmem:[%s306] ss:$2 sm:$0xff]
      %s308 = scalar_lea.vmem [#allocation2], 161
      %v309 = vld [vmem:[%s308] ss:$2 sm:$0x1]
      %s310 = scalar_lea.vmem [#allocation2], 193
      %v311 = vld [vmem:[%s310] ss:$2 sm:$0xff]
      %s312 = scalar_lea.vmem [#allocation2], 209
      %v313 = vld [vmem:[%s312] ss:$2 sm:$0x1]
      %s314 = scalar_lea.vmem [#allocation2], 241
      %v315 = vld [vmem:[%s314] ss:$2 sm:$0xff]
      %s316 = scalar_lea.vmem [#allocation2], 257
      %v317 = vld [vmem:[%s316] ss:$2 sm:$0x1]
      %s318 = scalar_lea.vmem [#allocation2], 289
      %v319 = vld [vmem:[%s318] ss:$2 sm:$0xff]
      %s320 = scalar_lea.vmem [#allocation2], 305
      %v321 = vld [vmem:[%s320] ss:$2 sm:$0x1]
      %s322 = scalar_lea.vmem [#allocation2], 337
      %v323 = vld [vmem:[%s322] ss:$2 sm:$0xff]
      %s324 = scalar_lea.vmem [#allocation2], 353
      %v325 = vld [vmem:[%s324] ss:$2 sm:$0x1]
      %s326 = scalar_lea.vmem [#allocation2], 385
      %v327 = vld [vmem:[%s326] ss:$2 sm:$0xff]
      %s328 = scalar_lea.vmem [#allocation2], 401
      %v329 = vld [vmem:[%s328] ss:$2 sm:$0x1]
      %v330 = vmax.f32 %v259, %v295
      %v331 = vmax.f32 %v261, %v297
      %v332 = vmax.f32 %v263, %v299
      %v333 = vmax.f32 %v265, %v301
      %v334 = vmax.f32 %v267, %v303
      %v335 = vmax.f32 %v269, %v305
      %v336 = vmax.f32 %v271, %v307
      %v337 = vmax.f32 %v273, %v309
      %v338 = vmax.f32 %v275, %v311
      %v339 = vmax.f32 %v277, %v313
      %v340 = vmax.f32 %v279, %v315
      %v341 = vmax.f32 %v281, %v317
      %v342 = vmax.f32 %v283, %v319
      %v343 = vmax.f32 %v285, %v321
      %v344 = vmax.f32 %v287, %v323
      %v345 = vmax.f32 %v289, %v325
      %v346 = vmax.f32 %v291, %v327
      %v347 = vmax.f32 %v293, %v329
      %v348 = vld [vmem:[%s226] ss:$2 sm:$0xff]
      %s349 = scalar_lea.vmem %s226, 16 [#allocation2]
      %v350 = vld [vmem:[%s349] ss:$2 sm:$0x1]
      %s351 = scalar_lea.vmem %s226, 48 [#allocation2]
      %v352 = vld [vmem:[%s351] ss:$2 sm:$0xff]
      %s353 = scalar_lea.vmem %s226, 64 [#allocation2]
      %v354 = vld [vmem:[%s353] ss:$2 sm:$0x1]
      %s355 = scalar_lea.vmem %s226, 96 [#allocation2]
      %v356 = vld [vmem:[%s355] ss:$2 sm:$0xff]
      %s357 = scalar_lea.vmem %s226, 112 [#allocation2]
      %v358 = vld [vmem:[%s357] ss:$2 sm:$0x1]
      %s359 = scalar_lea.vmem %s226, 144 [#allocation2]
      %v360 = vld [vmem:[%s359] ss:$2 sm:$0xff]
      %s361 = scalar_lea.vmem %s226, 160 [#allocation2]
      %v362 = vld [vmem:[%s361] ss:$2 sm:$0x1]
      %s363 = scalar_lea.vmem %s226, 192 [#allocation2]
      %v364 = vld [vmem:[%s363] ss:$2 sm:$0xff]
      %s365 = scalar_lea.vmem %s226, 208 [#allocation2]
      %v366 = vld [vmem:[%s365] ss:$2 sm:$0x1]
      %s367 = scalar_lea.vmem %s226, 240 [#allocation2]
      %v368 = vld [vmem:[%s367] ss:$2 sm:$0xff]
      %s369 = scalar_lea.vmem %s226, 256 [#allocation2]
      %v370 = vld [vmem:[%s369] ss:$2 sm:$0x1]
      %s371 = scalar_lea.vmem %s226, 288 [#allocation2]
      %v372 = vld [vmem:[%s371] ss:$2 sm:$0xff]
      %s373 = scalar_lea.vmem %s226, 304 [#allocation2]
      %v374 = vld [vmem:[%s373] ss:$2 sm:$0x1]
      %s375 = scalar_lea.vmem %s226, 336 [#allocation2]
      %v376 = vld [vmem:[%s375] ss:$2 sm:$0xff]
      %s377 = scalar_lea.vmem %s226, 352 [#allocation2]
      %v378 = vld [vmem:[%s377] ss:$2 sm:$0x1]
      %s379 = scalar_lea.vmem %s226, 384 [#allocation2]
      %v380 = vld [vmem:[%s379] ss:$2 sm:$0xff]
      %s381 = scalar_lea.vmem %s226, 400 [#allocation2]
      %v382 = vld [vmem:[%s381] ss:$2 sm:$0x1]
      %v383 = vmax.f32 %v330, %v348
      %v384 = vmax.f32 %v331, %v350
      %v385 = vmax.f32 %v332, %v352
      %v386 = vmax.f32 %v333, %v354
      %v387 = vmax.f32 %v334, %v356
      %v388 = vmax.f32 %v335, %v358
      %v389 = vmax.f32 %v336, %v360
      %v390 = vmax.f32 %v337, %v362
      %v391 = vmax.f32 %v338, %v364
      %v392 = vmax.f32 %v339, %v366
      %v393 = vmax.f32 %v340, %v368
      %v394 = vmax.f32 %v341, %v370
      %v395 = vmax.f32 %v342, %v372
      %v396 = vmax.f32 %v343, %v374
      %v397 = vmax.f32 %v344, %v376
      %v398 = vmax.f32 %v345, %v378
      %v399 = vmax.f32 %v346, %v380
      %v400 = vmax.f32 %v347, %v382
      %s401 = scalar_lea.vmem %s226, 1 [#allocation2]
      %v402 = vld [vmem:[%s401] ss:$2 sm:$0xff]
      %s403 = scalar_lea.vmem %s226, 17 [#allocation2]
      %v404 = vld [vmem:[%s403] ss:$2 sm:$0x1]
      %s405 = scalar_lea.vmem %s226, 49 [#allocation2]
      %v406 = vld [vmem:[%s405] ss:$2 sm:$0xff]
      %s407 = scalar_lea.vmem %s226, 65 [#allocation2]
      %v408 = vld [vmem:[%s407] ss:$2 sm:$0x1]
      %s409 = scalar_lea.vmem %s226, 97 [#allocation2]
      %v410 = vld [vmem:[%s409] ss:$2 sm:$0xff]
      %s411 = scalar_lea.vmem %s226, 113 [#allocation2]
      %v412 = vld [vmem:[%s411] ss:$2 sm:$0x1]
      %s413 = scalar_lea.vmem %s226, 145 [#allocation2]
      %v414 = vld [vmem:[%s413] ss:$2 sm:$0xff]
      %s415 = scalar_lea.vmem %s226, 161 [#allocation2]
      %v416 = vld [vmem:[%s415] ss:$2 sm:$0x1]
      %s417 = scalar_lea.vmem %s226, 193 [#allocation2]
      %v418 = vld [vmem:[%s417] ss:$2 sm:$0xff]
      %s419 = scalar_lea.vmem %s226, 209 [#allocation2]
      %v420 = vld [vmem:[%s419] ss:$2 sm:$0x1]
      %s421 = scalar_lea.vmem %s226, 241 [#allocation2]
      %v422 = vld [vmem:[%s421] ss:$2 sm:$0xff]
      %s423 = scalar_lea.vmem %s226, 257 [#allocation2]
      %v424 = vld [vmem:[%s423] ss:$2 sm:$0x1]
      %s425 = scalar_lea.vmem %s226, 289 [#allocation2]
      %v426 = vld [vmem:[%s425] ss:$2 sm:$0xff]
      %s427 = scalar_lea.vmem %s226, 305 [#allocation2]
      %v428 = vld [vmem:[%s427] ss:$2 sm:$0x1]
      %s429 = scalar_lea.vmem %s226, 337 [#allocation2]
      %v430 = vld [vmem:[%s429] ss:$2 sm:$0xff]
      %s431 = scalar_lea.vmem %s226, 353 [#allocation2]
      %v432 = vld [vmem:[%s431] ss:$2 sm:$0x1]
      %s433 = scalar_lea.vmem %s226, 385 [#allocation2]
      %v434 = vld [vmem:[%s433] ss:$2 sm:$0xff]
      %s435 = scalar_lea.vmem %s226, 401 [#allocation2]
      %v436 = vld [vmem:[%s435] ss:$2 sm:$0x1]
      %v437 = vmax.f32 %v383, %v402
      %v438 = vmax.f32 %v384, %v404
      %v439 = vmax.f32 %v385, %v406
      %v440 = vmax.f32 %v386, %v408
      %v441 = vmax.f32 %v387, %v410
      %v442 = vmax.f32 %v388, %v412
      %v443 = vmax.f32 %v389, %v414
      %v444 = vmax.f32 %v390, %v416
      %v445 = vmax.f32 %v391, %v418
      %v446 = vmax.f32 %v392, %v420
      %v447 = vmax.f32 %v393, %v422
      %v448 = vmax.f32 %v394, %v424
      %v449 = vmax.f32 %v395, %v426
      %v450 = vmax.f32 %v396, %v428
      %v451 = vmax.f32 %v397, %v430
      %v452 = vmax.f32 %v398, %v432
      %v453 = vmax.f32 %v399, %v434
      %v454 = vmax.f32 %v400, %v436
      %455 = vst.msk [vmem:[%s147] sm:$0xff] %vm148, %v437
      %456 = vst.msk [vmem:[%s147 + $0x8] sm:$0x1] %vm157, %v438
      %457 = vst.msk [vmem:[%s147 + $0x10] sm:$0xff] %vm148, %v439
      %458 = vst.msk [vmem:[%s147 + $0x18] sm:$0x1] %vm157, %v440
      %459 = vst.msk [vmem:[%s147 + $0x20] sm:$0xff] %vm148, %v441
      %460 = vst.msk [vmem:[%s147 + $0x28] sm:$0x1] %vm157, %v442
      %461 = vst.msk [vmem:[%s147 + $0x30] sm:$0xff] %vm148, %v443
      %462 = vst.msk [vmem:[%s147 + $0x38] sm:$0x1] %vm157, %v444
      %463 = vst.msk [vmem:[%s147 + $0x40] sm:$0xff] %vm148, %v445
      %464 = vst.msk [vmem:[%s147 + $0x48] sm:$0x1] %vm157, %v446
      %465 = vst.msk [vmem:[%s147 + $0x50] sm:$0xff] %vm148, %v447
      %466 = vst.msk [vmem:[%s147 + $0x58] sm:$0x1] %vm157, %v448
      %467 = vst.msk [vmem:[%s147 + $0x60] sm:$0xff] %vm148, %v449
      %468 = vst.msk [vmem:[%s147 + $0x68] sm:$0x1] %vm157, %v450
      %469 = vst.msk [vmem:[%s147 + $0x70] sm:$0xff] %vm148, %v451
      %470 = vst.msk [vmem:[%s147 + $0x78] sm:$0x1] %vm157, %v452
      %471 = vst.msk [vmem:[%s147 + $0x80] sm:$0xff] %vm148, %v453
      %472 = vst.msk [vmem:[%s147 + $0x88] sm:$0x1] %vm157, %v454
      %p473 = scmp.lt.s32.totalorder %s16, 1
      %s474 = scalar_select %p473, %s16, 1
      %p475 = scmp.lt.s32.totalorder %s17, 0
      %s476 = scalar_select %p475, %s17, 0
      %s477 = smul.addr %s474, 18
      %s478 = sadd.s32 %s476, %s477
      %s479 = smul.addr %s478, 8
      %s480 = scalar_lea.vmem %s1, %s479
      // Predicated region
      $region25: #{tpu_custom_call.1} parent=23 // pred_check
        %p481 = pneg %p72
      $region26: #{tpu_custom_call.1} parent=23 // pred_check_branch
        %483 = sbr.rel (%p481) target = $region28
      $region27: #{tpu_custom_call.1} parent=23 // pred_region
        _
      $region28: #{tpu_custom_call.1} parent=23 // pred_fallthru
        _
    $region24: #{tpu_custom_call.1} parent=5 // pred_fallthru
      _
    %p484 = scmp.le.s32.totalorder 2, %s7
    // Predicated region
    $region29: #{tpu_custom_call.1} parent=5 // pred_check
      %p485 = pneg %p484
    $region30: #{tpu_custom_call.1} parent=5 // pred_check_branch
      %487 = sbr.rel (%p485) target = $region32
    $region31: #{tpu_custom_call.1} parent=5 // pred_region
      %s488 = ssub.s32 %s7, 2
      // Predicated region
      $region33: #{tpu_custom_call.1} parent=31 // pred_check
        %p489 = pneg %p78
      $region34: #{tpu_custom_call.1} parent=31 // pred_check_branch
        %491 = sbr.rel (%p489) target = $region36
      $region35: #{tpu_custom_call.1} parent=31 // pred_region
        %p492 = scmp.lt.s32.totalorder %s18, 1
        %s493 = scalar_select %p492, %s18, 1
        %p494 = scmp.lt.s32.totalorder %s19, 0
        %s495 = scalar_select %p494, %s19, 0
        %s496 = smul.addr %s493, 18
        %s497 = sadd.s32 %s495, %s496
        %s498 = smul.addr %s497, 8
        %s499 = scalar_lea.vmem %s1, %s498
      $region36: #{tpu_custom_call.1} parent=31 // pred_fallthru
        _
    $region32: #{tpu_custom_call.1} parent=5 // pred_fallthru
      _
  $region6: #{tpu_custom_call.1} parent=0 // loop_footer
    %s11 = sadd.s32 1, %s7
  $region7: #{tpu_custom_call.1} parent=0 // loop_footer_branch
    %6 = sbr.rel target = $region3
  $region8: #{tpu_custom_call.1} parent=0 // loop_exit
    _

</llo_original>
